<compile_context>
chip_gen: v5e
topology: v5e:2x2
jax: 0.10.0
libtpu: 0.0.40
codegen_flags: <defaults>
</compile_context>

<pallas_src>
import jax
import jax.numpy as jnp
from jax.experimental import pallas as pl
from jax.experimental.pallas import tpu as pltpu

PARTS = 6
BN_EPS = 1e-5


def _part_kernel(x_ref, wred_ref, bred_ref, wfc_ref, bfc_ref, out_ref):
    # x_ref: (bt, hpp, W, Cin) -- one body-part slice, channels on the lane axis.
    # AdaptiveAvgPool2d((parts, 1)) as a plain sum; the 1/S is folded into wred.
    pooled = jnp.sum(x_ref[...], axis=(1, 2))                       # (bt, Cin) f32
    # DimReduceLayer: 1x1 conv (no bias) + BN2d(eval) + ReLU (BN folded into weights).
    red = jnp.dot(pooled.astype(jnp.bfloat16), wred_ref[...],
                  preferred_element_type=jnp.float32)               # (bt, Cr)
    red = jnp.maximum(red + bred_ref[...], 0.0)
    # Per-part fc: Linear + BN1d(eval) + ReLU (BN + linear bias folded into weights).
    y = jnp.dot(red.astype(jnp.bfloat16), wfc_ref[0],
                preferred_element_type=jnp.float32)                 # (bt, F)
    y = jnp.maximum(y + bfc_ref[0], 0.0)
    out_ref[...] = y                                                # lane-dense column slab


def sysu_network_part_forward(feat_nhwc, camid, params, parts=PARTS, b_tile=None):
    """Eval-mode forward of SYSUNetworkPart from the backbone feature map (NHWC)."""
    B, H, W, Cin = feat_nhwc.shape
    assert H % parts == 0, "adaptive pool is exact only when H % parts == 0"
    hpp = H // parts
    S = hpp * W

    # Static modal selection, mirroring `if camid[0] in [2, 5]` in PyTorch.
    # NOTE: needs a concrete camid (eval-mode dispatch); not jit-traceable.
    modal = 0 if int(camid[0]) in (2, 5) else 1

    # --- fold eval-BN + pool 1/S + fc bias into scale/bias (one-time glue) ---
    wred = params["reduce_w"][modal]                                   # (Cr, Cin)
    sred = params["reduce_bn_gamma"][modal] / jnp.sqrt(
        params["reduce_bn_var"][modal] + BN_EPS)                       # (Cr,)
    bred = params["reduce_bn_beta"][modal] - params["reduce_bn_mean"][modal] * sred
    # x_sum @ wred_eff  ==  BN_scale * conv1x1(mean_over_part(x))
    wred_eff = (wred.T * (sred / S)[None, :]).astype(jnp.bfloat16)     # (Cin, Cr) bf16
    bred2 = bred.reshape(1, -1).astype(jnp.float32)                    # (1, Cr)

    wfc = params["fc_w"][modal]                                        # (parts, F, Cr)
    sfc = params["fc_bn_gamma"][modal] / jnp.sqrt(
        params["fc_bn_var"][modal] + BN_EPS)                           # (parts, F)
    bfc = (params["fc_bn_beta"][modal]
           + (params["fc_b"][modal] - params["fc_bn_mean"][modal]) * sfc)   # (parts, F)
    wfc_eff = (jnp.transpose(wfc, (0, 2, 1)) * sfc[:, None, :]).astype(jnp.bfloat16)  # (parts, Cr, F)
    bfc3 = bfc[:, None, :].astype(jnp.float32)                         # (parts, 1, F)

    Cr = wred.shape[0]
    F = wfc.shape[1]

    if b_tile is None:
        b_tile = B
    assert B % b_tile == 0, "b_tile must divide B"
    if b_tile != B:
        assert b_tile % 8 == 0, "tiled batch blocks should be sublane-aligned"
    nb = B // b_tile

    out = pl.pallas_call(
        _part_kernel,
        out_shape=jax.ShapeDtypeStruct((B, parts * F), jnp.float32),
        grid=(nb, parts),
        in_specs=[
            # one body-part slice of the NHWC feature map (no wrapper copy)
            pl.BlockSpec((b_tile, hpp, W, Cin), lambda b, i: (b, i, 0, 0)),
            pl.BlockSpec((Cin, Cr), lambda b, i: (0, 0)),       # shared reduce weight
            pl.BlockSpec((1, Cr), lambda b, i: (0, 0)),
            pl.BlockSpec((1, Cr, F), lambda b, i: (i, 0, 0)),   # per-part fc weight
            pl.BlockSpec((1, 1, F), lambda b, i: (i, 0, 0)),
        ],
        # write directly in torch.cat(fc, dim=1) order, lane-dense
        out_specs=pl.BlockSpec((b_tile, F), lambda b, i: (b, i)),
        compiler_params=pltpu.CompilerParams(
            dimension_semantics=("parallel", "parallel")),
        # TODO(synk): at production shapes (B~64, Cin=2048) shrink b_tile or raise
        # vmem_limit_bytes so the double-buffered input block fits v7x's 64 MiB VMEM.
    )(feat_nhwc, wred_eff, bred2, wfc_eff, bfc3)

    return out  # already (B, parts*F) in concat order


def reference_forward(feat_nhwc, camid, params, parts=PARTS):
    """Pure-JAX f32 reference mirroring the PyTorch eval path."""
    B, H, W, Cin = feat_nhwc.shape
    hpp = H // parts
    modal = 0 if int(camid[0]) in (2, 5) else 1

    pooled = feat_nhwc.reshape(B, parts, hpp, W, Cin).mean(axis=(2, 3))  # (B, parts, Cin)
    wred = params["reduce_w"][modal]                                     # (Cr, Cin)
    red = jnp.einsum("bpc,oc->bpo", pooled, wred)                        # (B, parts, Cr)
    g = params["reduce_bn_gamma"][modal]
    bt = params["reduce_bn_beta"][modal]
    m = params["reduce_bn_mean"][modal]
    v = params["reduce_bn_var"][modal]
    red = jnp.maximum((red - m) / jnp.sqrt(v + BN_EPS) * g + bt, 0.0)

    fcs = []
    for i in range(parts):
        part_i = red[:, i, :]                                            # (B, Cr)
        w = params["fc_w"][modal][i]                                     # (F, Cr)
        b = params["fc_b"][modal][i]
        y = part_i @ w.T + b
        gg = params["fc_bn_gamma"][modal][i]
        bb = params["fc_bn_beta"][modal][i]
        mm = params["fc_bn_mean"][modal][i]
        vv = params["fc_bn_var"][modal][i]
        y = jnp.maximum((y - mm) / jnp.sqrt(vv + BN_EPS) * gg + bb, 0.0)
        fcs.append(y)
    return jnp.concatenate(fcs, axis=1)


def init_params(key, Cin, Cr, F, parts=PARTS, modal_number=2):
    ks = jax.random.split(key, 12)
    p = {}
    p["reduce_w"] = 0.05 * jax.random.normal(ks[0], (modal_number, Cr, Cin), jnp.float32)
    p["reduce_bn_gamma"] = 1.0 + 0.1 * jax.random.normal(ks[1], (modal_number, Cr), jnp.float32)
    p["reduce_bn_beta"] = 0.1 * jax.random.normal(ks[2], (modal_number, Cr), jnp.float32)
    p["reduce_bn_mean"] = 0.1 * jax.random.normal(ks[3], (modal_number, Cr), jnp.float32)
    p["reduce_bn_var"] = 0.5 + jax.random.uniform(ks[4], (modal_number, Cr), jnp.float32)
    # index 0 -> fc_N (camid in [2,5]); index 1 -> fc_R
    p["fc_w"] = 0.05 * jax.random.normal(ks[5], (modal_number, parts, F, Cr), jnp.float32)
    p["fc_b"] = 0.05 * jax.random.normal(ks[6], (modal_number, parts, F), jnp.float32)
    p["fc_bn_gamma"] = 1.0 + 0.1 * jax.random.normal(ks[7], (modal_number, parts, F), jnp.float32)
    p["fc_bn_beta"] = 0.1 * jax.random.normal(ks[8], (modal_number, parts, F), jnp.float32)
    p["fc_bn_mean"] = 0.1 * jax.random.normal(ks[9], (modal_number, parts, F), jnp.float32)
    p["fc_bn_var"] = 0.5 + jax.random.uniform(ks[10], (modal_number, parts, F), jnp.float32)
    return p


if __name__ == "__main__":
    # Small stand-in shapes with TPU-friendly (lane=128-aligned) channel dims.
    # (Real model: Cin=2048, Cr=768, F=128.)
    B, H, W, Cin = 2, 12, 4, 256
    Cr, F = 128, 128

    key = jax.random.PRNGKey(0)
    k_feat, k_params = jax.random.split(key)
    # Backbone feature map in NHWC (the natural TPU layout).
    feat = jax.random.normal(k_feat, (B, H, W, Cin), jnp.float32)
    camid = jnp.array([2, 3], dtype=jnp.int32)           # camid[0] in [2,5] -> modal 0 (fc_N)
    params = init_params(k_params, Cin, Cr, F)

    fc_all = jax.block_until_ready(sysu_network_part_forward(feat, camid, params))
    ref = reference_forward(feat, camid, params)
    assert fc_all.shape == (B, PARTS * F)
    # bf16 MXU inputs (f32 accumulation) -> loosened tolerance vs f32 reference.
    assert jnp.allclose(fc_all, ref, atol=3e-2, rtol=3e-2), "mismatch vs reference (modal 0)"

    # also exercise the other modal branch (fc_R / reduce_layer[1])
    camid_r = jnp.array([1, 1], dtype=jnp.int32)
    fc_all_r = jax.block_until_ready(sysu_network_part_forward(feat, camid_r, params))
    ref_r = reference_forward(feat, camid_r, params)
    assert jnp.allclose(fc_all_r, ref_r, atol=3e-2, rtol=3e-2), "mismatch vs reference (modal 1)"

    print("KERNEL_OK")
</pallas_src>

<mosaic_0001>
module attributes {stable_mosaic.version = 11 : i64} {
  func.func @_part_kernel(%arg0: i32, %arg1: i32, %arg2: memref<2x2x4x256xf32, #tpu.memory_space<vmem>>, %arg3: memref<256x128xbf16, #tpu.memory_space<vmem>>, %arg4: memref<1x128xf32, #tpu.memory_space<vmem>>, %arg5: memref<1x128x128xbf16, #tpu.memory_space<vmem>>, %arg6: memref<1x1x128xf32, #tpu.memory_space<vmem>>, %arg7: memref<2x128xf32, #tpu.memory_space<vmem>>) attributes {dimension_semantics = [#tpu.dimension_semantics<parallel>, #tpu.dimension_semantics<parallel>], iteration_bounds = array<i64: 1, 6>, scalar_prefetch = 0 : i64, scratch_operands = 0 : i64, tpu.core_type = #tpu.core_type<tc>, window_params = [{transform_indices = @transform_0, window_bounds = array<i64: 2, 2, 4, 256>}, {pipeline_mode = #tpu.pipeline_mode<synchronous>, transform_indices = @transform_1, window_bounds = array<i64: 256, 128>}, {pipeline_mode = #tpu.pipeline_mode<synchronous>, transform_indices = @transform_2, window_bounds = array<i64: 1, 128>}, {transform_indices = @transform_3, window_bounds = array<i64: 1, 128, 128>}, {transform_indices = @transform_4, window_bounds = array<i64: 1, 1, 128>}, {transform_indices = @transform_5, window_bounds = array<i64: 2, 128>}]} {
    %c0 = arith.constant 0 : index
    %c0_0 = arith.constant 0 : index
    %c0_1 = arith.constant 0 : index
    %c0_2 = arith.constant 0 : index
    %0 = vector.load %arg2[%c0, %c0_0, %c0_1, %c0_2] : memref<2x2x4x256xf32, #tpu.memory_space<vmem>>, vector<2x2x4x256xf32>
    %cst = arith.constant dense<0.000000e+00> : vector<2x256xf32>
    %1 = vector.multi_reduction <add>, %0, %cst [1, 2] : vector<2x2x4x256xf32> to vector<2x256xf32>
    %2 = arith.truncf %1 : vector<2x256xf32> to vector<2x256xbf16>
    %c0_3 = arith.constant 0 : index
    %c0_4 = arith.constant 0 : index
    %3 = vector.load %arg3[%c0_3, %c0_4] : memref<256x128xbf16, #tpu.memory_space<vmem>>, vector<256x128xbf16>
    %cst_5 = arith.constant dense<0.000000e+00> : vector<2x128xf32>
    %4 = tpu.matmul %2, %3, %cst_5 {dimension_numbers = #tpu.dot_dimension_numbers<[1], [0], [0], [1], [0, 0, 1, 1], [], []>} : vector<2x256xbf16>, vector<256x128xbf16>, vector<2x128xf32> -> vector<2x128xf32>
    %c0_6 = arith.constant 0 : index
    %c0_7 = arith.constant 0 : index
    %5 = vector.load %arg4[%c0_6, %c0_7] : memref<1x128xf32, #tpu.memory_space<vmem>>, vector<1x128xf32>
    %6 = vector.broadcast %5 : vector<1x128xf32> to vector<2x128xf32>
    %7 = arith.addf %4, %6 : vector<2x128xf32>
    %cst_8 = arith.constant 0.000000e+00 : f32
    %8 = vector.broadcast %cst_8 : f32 to vector<2x128xf32>
    %9 = arith.maximumf %7, %8 : vector<2x128xf32>
    %10 = arith.truncf %9 : vector<2x128xf32> to vector<2x128xbf16>
    %c0_9 = arith.constant 0 : index
    %c0_10 = arith.constant 0 : index
    %c0_11 = arith.constant 0 : index
    %11 = vector.load %arg5[%c0_9, %c0_10, %c0_11] : memref<1x128x128xbf16, #tpu.memory_space<vmem>>, vector<1x128x128xbf16>
    %12 = vector.shape_cast %11 : vector<1x128x128xbf16> to vector<128x128xbf16>
    %cst_12 = arith.constant dense<0.000000e+00> : vector<2x128xf32>
    %13 = tpu.matmul %10, %12, %cst_12 {dimension_numbers = #tpu.dot_dimension_numbers<[1], [0], [0], [1], [0, 0, 1, 1], [], []>} : vector<2x128xbf16>, vector<128x128xbf16>, vector<2x128xf32> -> vector<2x128xf32>
    %c0_13 = arith.constant 0 : index
    %c0_14 = arith.constant 0 : index
    %c0_15 = arith.constant 0 : index
    %14 = vector.load %arg6[%c0_13, %c0_14, %c0_15] : memref<1x1x128xf32, #tpu.memory_space<vmem>>, vector<1x1x128xf32>
    %15 = vector.shape_cast %14 : vector<1x1x128xf32> to vector<1x128xf32>
    %16 = vector.broadcast %15 : vector<1x128xf32> to vector<2x128xf32>
    %17 = arith.addf %13, %16 : vector<2x128xf32>
    %cst_16 = arith.constant 0.000000e+00 : f32
    %18 = vector.broadcast %cst_16 : f32 to vector<2x128xf32>
    %19 = arith.maximumf %17, %18 : vector<2x128xf32>
    %c0_17 = arith.constant 0 : index
    %c0_18 = arith.constant 0 : index
    %20 = vector.load %arg7[%c0_17, %c0_18] : memref<2x128xf32, #tpu.memory_space<vmem>>, vector<2x128xf32>
    tpu.vector_store %arg7[%c0_17, %c0_18], %19 {strides = array<i32>} : memref<2x128xf32, #tpu.memory_space<vmem>>, vector<2x128xf32>,
    return
  }
  func.func @transform_0(%arg0: i32, %arg1: i32) -> (i32, i32, i32, i32) {
    %c0_i32 = arith.constant 0 : i32
    %c0_i32_0 = arith.constant 0 : i32
    %c0_i32_1 = arith.constant 0 : i32
    return %arg0, %arg1, %c0_i32, %c0_i32_0 : i32, i32, i32, i32
  }
  func.func @transform_1(%arg0: i32, %arg1: i32) -> (i32, i32) {
    %c0_i32 = arith.constant 0 : i32
    %c0_i32_0 = arith.constant 0 : i32
    %c0_i32_1 = arith.constant 0 : i32
    return %c0_i32, %c0_i32_0 : i32, i32
  }
  func.func @transform_2(%arg0: i32, %arg1: i32) -> (i32, i32) {
    %c0_i32 = arith.constant 0 : i32
    %c0_i32_0 = arith.constant 0 : i32
    %c0_i32_1 = arith.constant 0 : i32
    return %c0_i32, %c0_i32_0 : i32, i32
  }
  func.func @transform_3(%arg0: i32, %arg1: i32) -> (i32, i32, i32) {
    %c0_i32 = arith.constant 0 : i32
    %c0_i32_0 = arith.constant 0 : i32
    %c0_i32_1 = arith.constant 0 : i32
    return %arg1, %c0_i32, %c0_i32_0 : i32, i32, i32
  }
  func.func @transform_4(%arg0: i32, %arg1: i32) -> (i32, i32, i32) {
    %c0_i32 = arith.constant 0 : i32
    %c0_i32_0 = arith.constant 0 : i32
    %c0_i32_1 = arith.constant 0 : i32
    return %arg1, %c0_i32, %c0_i32_0 : i32, i32, i32
  }
  func.func @transform_5(%arg0: i32, %arg1: i32) -> (i32, i32) {
    %c0_i32 = arith.constant 0 : i32
    return %arg0, %arg1 : i32, i32
  }
}

</mosaic_0001>

<llo_original>
// kernel: tpu_custom_call.1
$region0: #{tpu_custom_call.1}
  #allocation0 [shape = 'u32[]', space=smem, size = 0x4, offset = 0x4, fixed_abs, tag = 'smem constant byte address 0x4 - core index']
  #allocation1 [shape = 'u32[72,128]{1,0:T(1,128)}', space=vmem, size = 0x9000, scoped, tag = 'internal scratch']
  #allocation10 [shape = 's32[]', space=sflag, size = 0x4, offset = 0, fixed_abs, tag = 'sflag constant byte address 0x0 - dummy sync flag']
  %s0 = inlined_call_operand.hbm [shape: f32[2,12,4,256], index: 0, kind: input, shape index: {}]
  %s1 = inlined_call_operand.hbm [shape: bf16[256,128], index: 1, kind: input, shape index: {}]
  %s2 = inlined_call_operand.vmem [shape: f32[1,128], index: 2, kind: input, shape index: {}]
  %s3 = inlined_call_operand.hbm [shape: bf16[6,128,128], index: 3, kind: input, shape index: {}]
  %s4 = inlined_call_operand.hbm [shape: f32[6,1,128], index: 4, kind: input, shape index: {}]
  %s5 = inlined_call_operand.hbm [shape: f32[2,768], index: 5, kind: output, shape index: {}]
  %s6 = sld [smem:[#allocation0]]
  $region69: #{tpu_custom_call.1} parent=0
    _
  %s8 = ssub.s32 1, %s6
  %s9 = scalar_select 0, %s8, %s6
  $region1: #{tpu_custom_call.1} parent=0
    #allocation2 [shape = 'u8[32768]{0}', space=vmem, size = 0x8000, scoped, tag = 'input window, operand 0']
    #allocation3 [shape = 's32[2]{0}', space=sflag, size = 0x8, scoped, tag = 'scoped memory for tpu_custom_call.1']
    #allocation4 [shape = 's32[2]{0}', space=sflag, size = 0x8, scoped, tag = 'scoped memory for tpu_custom_call.1']
    #allocation5 [shape = 'u8[65536]{0}', space=vmem, size = 0x10000, scoped, tag = 'input window, operand 1, single buffered']
    #allocation6 [shape = 's32[1]{0}', space=sflag, size = 0x4, scoped, tag = 'scoped memory for tpu_custom_call.1']
    #allocation7 [shape = 'u8[65536]{0}', space=vmem, size = 0x10000, scoped, tag = 'input window, operand 3']
    #allocation8 [shape = 'u8[1024]{0}', space=vmem, size = 0x400, scoped, tag = 'input window, operand 4']
    #allocation9 [shape = 'u8[2048]{0}', space=vmem, size = 0x800, scoped, tag = 'output window, operand 0']
    %10 = vsyncpa [#allocation3], 0
    %s11 = scalar_lea.sflag [#allocation3], 1
    %12 = vsyncpa %s11, 0
    %13 = vsyncpa [#allocation6], 0
    %14 = vsyncpa [#allocation4], 0
    %s15 = scalar_lea.sflag [#allocation4], 1
    %16 = vsyncpa %s15, 0
    loop: start=0, step=1, limit=8
    $region2: #{tpu_custom_call.1} parent=1 // loop_pre_header
      _
    $region3: #{tpu_custom_call.1} parent=1 // loop_header
      %s18 = sphi 0, %s22
      %p19 = scmp.ge.s32.totalorder %s18, 8
      %s25 = sphi 0, %s37
      %s26 = sphi 0, %s33
      %s27 = sphi 0, %s25
      %s28 = sphi 0, %s26
      %s29 = sphi 0, %s27
      %s30 = sphi 0, %s28
      %s42 = sphi 0, %s44
      %s45 = sphi 0, %s42
      %s46 = sphi 0, %s45
      %s62 = sphi 0, %s46
      %s66 = sphi 0, %s66
      %s68 = sphi 0, %s66
      %s69 = sphi 0, %s68
      %s83 = sphi 0, %s69
      %s87 = sphi 0, %s87
      %s89 = sphi 0, %s87
      %s90 = sphi 0, %s89
      %s104 = sphi 0, %s90
      %s110 = sphi 0, %s112
      %s113 = sphi 0, %s110
      %s114 = sphi 0, %s113
      %s130 = sphi 0, %s114
      %s136 = sphi 0, %s138
      %s139 = sphi 0, %s136
      %s140 = sphi 0, %s139
      %s156 = sphi 0, %s140
      %s164 = sphi 0, %s166
      %s167 = sphi 0, %s164
      %s168 = sphi 0, %s167
      %s184 = sphi 0, %s168
    $region4: #{tpu_custom_call.1} parent=1 // loop_header_branch
      %21 = sbr.rel (%p19) target = $region8
    $region5: #{tpu_custom_call.1} parent=1 // loop_body
      %s23 = ssub.s32 %s18, 1
      %s24 = ssub.s32 %s18, 2
      %s31 = sadd.s32 1, %s26
      %p32 = scmp.ge.s32.totalorder %s31, 6
      %s33 = scalar_select %p32, 0, %s31
      %s34 = sadd.s32 1, %s25
      %s35 = scalar_select %p32, %s34, %s25
      %p36 = scmp.ge.s32.totalorder %s35, 1
      %s37 = scalar_select %p36, 0, %s35
      %s38 = ssub.s32 %s25, %s37
      %s39 = ssub.s32 %s26, %s33
      %s40 = sor.u32 %s38, %s39
      %p41 = scmp.eq.s32.totalorder %s40, 0
      %s43 = sadd.s32 %s42, 1
      %s44 = scalar_select %p41, %s42, %s43
      %p47 = pneg %p41
      %p48 = scmp.eq.s32.totalorder %s18, 5
      %p49 = por %p47, %p48
      %p50 = scmp.ne.s32.totalorder %s42, %s45
      %p51 = scmp.eq.s32.totalorder %s18, 0
      %p52 = por %p50, %p51
      %p53 = scmp.ne.s32.totalorder %s42, %s45
      %p54 = scmp.eq.s32.totalorder %s23, 5
      %p55 = por %p53, %p54
      %p56 = scmp.ne.s32.totalorder %s45, %s46
      %p57 = scmp.eq.s32.totalorder %s23, 0
      %p58 = por %p56, %p57
      %p59 = scmp.ne.s32.totalorder %s45, %s46
      %p60 = scmp.eq.s32.totalorder %s24, 5
      %p61 = por %p59, %p60
      %p63 = scmp.ne.s32.totalorder %s46, %s62
      %p64 = scmp.eq.s32.totalorder %s24, 0
      %p65 = por %p63, %p64
      %s67 = sadd.s32 %s66, 1
      %p70 = scmp.eq.s32.totalorder %s18, 5
      %p71 = scmp.ne.s32.totalorder %s66, %s68
      %p72 = scmp.eq.s32.totalorder %s18, 0
      %p73 = por %p71, %p72
      %p74 = scmp.ne.s32.totalorder %s66, %s68
      %p75 = scmp.eq.s32.totalorder %s23, 5
      %p76 = por %p74, %p75
      %p77 = scmp.ne.s32.totalorder %s68, %s69
      %p78 = scmp.eq.s32.totalorder %s23, 0
      %p79 = por %p77, %p78
      %p80 = scmp.ne.s32.totalorder %s68, %s69
      %p81 = scmp.eq.s32.totalorder %s24, 5
      %p82 = por %p80, %p81
      %p84 = scmp.ne.s32.totalorder %s69, %s83
      %p85 = scmp.eq.s32.totalorder %s24, 0
      %p86 = por %p84, %p85
      %s88 = sadd.s32 %s87, 1
      %p91 = scmp.eq.s32.totalorder %s18, 5
      %p92 = scmp.ne.s32.totalorder %s87, %s89
      %p93 = scmp.eq.s32.totalorder %s18, 0
      %p94 = por %p92, %p93
      %p95 = scmp.ne.s32.totalorder %s87, %s89
      %p96 = scmp.eq.s32.totalorder %s23, 5
      %p97 = por %p95, %p96
      %p98 = scmp.ne.s32.totalorder %s89, %s90
      %p99 = scmp.eq.s32.totalorder %s23, 0
      %p100 = por %p98, %p99
      %p101 = scmp.ne.s32.totalorder %s89, %s90
      %p102 = scmp.eq.s32.totalorder %s24, 5
      %p103 = por %p101, %p102
      %p105 = scmp.ne.s32.totalorder %s90, %s104
      %p106 = scmp.eq.s32.totalorder %s24, 0
      %p107 = por %p105, %p106
      %s108 = ssub.s32 %s26, %s33
      %p109 = scmp.eq.s32.totalorder %s108, 0
      %s111 = sadd.s32 %s110, 1
      %s112 = scalar_select %p109, %s110, %s111
      %p115 = pneg %p109
      %p116 = scmp.eq.s32.totalorder %s18, 5
      %p117 = por %p115, %p116
      %p118 = scmp.ne.s32.totalorder %s110, %s113
      %p119 = scmp.eq.s32.totalorder %s18, 0
      %p120 = por %p118, %p119
      %p121 = scmp.ne.s32.totalorder %s110, %s113
      %p122 = scmp.eq.s32.totalorder %s23, 5
      %p123 = por %p121, %p122
      %p124 = scmp.ne.s32.totalorder %s113, %s114
      %p125 = scmp.eq.s32.totalorder %s23, 0
      %p126 = por %p124, %p125
      %p127 = scmp.ne.s32.totalorder %s113, %s114
      %p128 = scmp.eq.s32.totalorder %s24, 5
      %p129 = por %p127, %p128
      %p131 = scmp.ne.s32.totalorder %s114, %s130
      %p132 = scmp.eq.s32.totalorder %s24, 0
      %p133 = por %p131, %p132
      %s134 = ssub.s32 %s26, %s33
      %p135 = scmp.eq.s32.totalorder %s134, 0
      %s137 = sadd.s32 %s136, 1
      %s138 = scalar_select %p135, %s136, %s137
      %p141 = pneg %p135
      %p142 = scmp.eq.s32.totalorder %s18, 5
      %p143 = por %p141, %p142
      %p144 = scmp.ne.s32.totalorder %s136, %s139
      %p145 = scmp.eq.s32.totalorder %s18, 0
      %p146 = por %p144, %p145
      %p147 = scmp.ne.s32.totalorder %s136, %s139
      %p148 = scmp.eq.s32.totalorder %s23, 5
      %p149 = por %p147, %p148
      %p150 = scmp.ne.s32.totalorder %s139, %s140
      %p151 = scmp.eq.s32.totalorder %s23, 0
      %p152 = por %p150, %p151
      %p153 = scmp.ne.s32.totalorder %s139, %s140
      %p154 = scmp.eq.s32.totalorder %s24, 5
      %p155 = por %p153, %p154
      %p157 = scmp.ne.s32.totalorder %s140, %s156
      %p158 = scmp.eq.s32.totalorder %s24, 0
      %p159 = por %p157, %p158
      %s160 = ssub.s32 %s25, %s37
      %s161 = ssub.s32 %s26, %s33
      %s162 = sor.u32 %s160, %s161
      %p163 = scmp.eq.s32.totalorder %s162, 0
      %s165 = sadd.s32 %s164, 1
      %s166 = scalar_select %p163, %s164, %s165
      %p169 = pneg %p163
      %p170 = scmp.eq.s32.totalorder %s18, 5
      %p171 = por %p169, %p170
      %p172 = scmp.ne.s32.totalorder %s164, %s167
      %p173 = scmp.eq.s32.totalorder %s18, 0
      %p174 = por %p172, %p173
      %p175 = scmp.ne.s32.totalorder %s164, %s167
      %p176 = scmp.eq.s32.totalorder %s23, 5
      %p177 = por %p175, %p176
      %p178 = scmp.ne.s32.totalorder %s167, %s168
      %p179 = scmp.eq.s32.totalorder %s23, 0
      %p180 = por %p178, %p179
      %p181 = scmp.ne.s32.totalorder %s167, %s168
      %p182 = scmp.eq.s32.totalorder %s24, 5
      %p183 = por %p181, %p182
      %p185 = scmp.ne.s32.totalorder %s168, %s184
      %p186 = scmp.eq.s32.totalorder %s24, 0
      %p187 = por %p185, %p186
      %p188 = scmp.le.s32.totalorder 1, %s18
      %p189 = scmp.lt.s32.totalorder %s18, 7
      %p190 = pnand %p188, %p189
      %p191 = pneg %p190
      // Predicated region
      $region9: #{tpu_custom_call.1} parent=5 // pred_check
        _
      $region10: #{tpu_custom_call.1} parent=5 // pred_check_branch
        %193 = sbr.rel (%p190) target = $region12
      $region11: #{tpu_custom_call.1} parent=5 // pred_region
        %s194 = ssub.s32 %s18, 1
        // Predicated region
        $region13: #{tpu_custom_call.1} parent=11 // pred_check
          %p195 = pneg %p79
        $region14: #{tpu_custom_call.1} parent=11 // pred_check_branch
          %197 = sbr.rel (%p195) target = $region16
        $region15: #{tpu_custom_call.1} parent=11 // pred_region
          %199 = vsyncadd [#allocation6], 0
          %s200 = sshll.u32 %s1, 4
          %s201 = int_to_ptr.hbm [resolvable:$true] %s200
          %s202 = sshll.u32 [#allocation5], 4
          %s203 = int_to_ptr.vmem [resolvable:$true] %s202
          %208 = dma.hbm_to_vmem [thread:$0]  %s201, 2048, %s203, [#allocation6], 64, 64, 4
        $region16: #{tpu_custom_call.1} parent=11 // pred_fallthru
          _
        // Predicated region
        $region17: #{tpu_custom_call.1} parent=11 // pred_check
          %p209 = pneg %p100
        $region18: #{tpu_custom_call.1} parent=11 // pred_check_branch
          %211 = sbr.rel (%p209) target = $region20
        $region19: #{tpu_custom_call.1} parent=11 // pred_region
          _
        $region20: #{tpu_custom_call.1} parent=11 // pred_fallthru
          _
      $region12: #{tpu_custom_call.1} parent=5 // pred_fallthru
        _
      %p212 = scmp.lt.s32.totalorder %s18, 6
      // Predicated region
      $region21: #{tpu_custom_call.1} parent=5 // pred_check
        %p213 = pneg %p212
      $region22: #{tpu_custom_call.1} parent=5 // pred_check_branch
        %215 = sbr.rel (%p213) target = $region24
      $region23: #{tpu_custom_call.1} parent=5 // pred_region
        // Predicated region
        $region25: #{tpu_custom_call.1} parent=23 // pred_check
          %p216 = pneg %p52
        $region26: #{tpu_custom_call.1} parent=23 // pred_check_branch
          %218 = sbr.rel (%p216) target = $region28
        $region27: #{tpu_custom_call.1} parent=23 // pred_region
          #allocation11 [shape = 'u32[6]{0}', space=smem, size = 0x18, scoped, tag = 'DMA stride descriptor']
          %s219 = sand.u32 %s18, 1
          %s220 = scalar_lea.sflag [#allocation3], %s219
          %s221 = sand.u32 %s42, 1
          %s222 = smul.addr %s221, 32
          %s223 = scalar_lea.vmem [#allocation2], %s222
          %s224 = smul.u32 2, %s25
          %s225 = smul.u32 2, %s26
          %227 = vsyncadd %s220, 0
          %s228 = smul.addr %s225, 2
          %s229 = smul.addr %s224, 24
          %s230 = sadd.s32 %s228, %s229
          %s231 = smul.addr %s230, 4
          %s232 = scalar_lea.hbm %s0, %s231
          %s234 = sshll.u32 1, 14
          %s235 = sxor.u32 4294967295, %s234
          %s237 = sld [smem:[#allocation0]]
          %s238 = sadd.s32 2, %s237
          %s240 = sshll.u32 7, 26
          %s241 = sxor.u32 4294967295, %s240
          %s242 = sand.u32 0, %s241
          %s243 = sshll.u32 %s238, 26
          %s244 = sor.u32 %s242, %s243
          %s245 = sshll.u32 %s232, 4
          %s246 = int_to_ptr.hbm [resolvable:$true] %s245
          %s247 = sshll.u32 %s223, 4
          %s248 = int_to_ptr.vmem [resolvable:$true] %s247
          %254 = sst [smem:[#allocation11]] 1536
          %s255 = scalar_lea.smem [#allocation11], 1
          %256 = sst [smem:[%s255]] 256
          %s257 = scalar_lea.smem [#allocation11], 2
          %258 = sst [smem:[%s257]] 2
          %s259 = scalar_lea.smem [#allocation11], 3
          %260 = sst [smem:[%s259]] 128
          %s261 = scalar_lea.smem [#allocation11], 4
          %262 = sst [smem:[%s261]] 128
          %s263 = scalar_lea.smem [#allocation11], 5
          %264 = sst [smem:[%s263]] 8
          %266 = dma.general %s246, 512, %s248, %s220, [#allocation10], [#allocation11], %s244, 0
        $region28: #{tpu_custom_call.1} parent=23 // pred_fallthru
          _
        // Predicated region
        $region29: #{tpu_custom_call.1} parent=23 // pred_check
          %p267 = pneg %p120
        $region30: #{tpu_custom_call.1} parent=23 // pred_check_branch
          %269 = sbr.rel (%p267) target = $region32
        $region31: #{tpu_custom_call.1} parent=23 // pred_region
          %s270 = sand.u32 %s18, 1
          %s271 = scalar_lea.sflag [#allocation3], %s270
          %s272 = sand.u32 %s110, 1
          %s273 = smul.addr %s272, 64
          %s274 = scalar_lea.vmem [#allocation7], %s273
          %276 = vsyncadd %s271, 0
          %s277 = smul.addr %s26, 16
          %s278 = smul.addr %s277, 4
          %s279 = scalar_lea.hbm %s3, %s278
          %s280 = sshll.u32 %s279, 4
          %s281 = int_to_ptr.hbm [resolvable:$true] %s280
          %s282 = sshll.u32 %s274, 4
          %s283 = int_to_ptr.vmem [resolvable:$true] %s282
          %288 = dma.hbm_to_vmem [thread:$0]  %s281, 1024, %s283, %s271, 64, 64, 4
        $region32: #{tpu_custom_call.1} parent=23 // pred_fallthru
          _
        // Predicated region
        $region33: #{tpu_custom_call.1} parent=23 // pred_check
          %p289 = pneg %p146
        $region34: #{tpu_custom_call.1} parent=23 // pred_check_branch
          %291 = sbr.rel (%p289) target = $region36
        $region35: #{tpu_custom_call.1} parent=23 // pred_region
          %s292 = sand.u32 %s18, 1
          %s293 = scalar_lea.sflag [#allocation3], %s292
          %s294 = sand.u32 %s136, 1
          %s295 = scalar_lea.vmem [#allocation8], %s294
          %297 = vsyncadd %s293, 0
          %s298 = scalar_lea.hbm %s4, %s26
          %s300 = sshll.u32 %s298, 4
          %s301 = int_to_ptr.hbm [resolvable:$true] %s300
          %s302 = sshll.u32 %s295, 4
          %s303 = int_to_ptr.vmem [resolvable:$true] %s302
          %305 = dma.hbm_to_vmem [thread:$0]  %s301, 16, %s303, %s293
        $region36: #{tpu_custom_call.1} parent=23 // pred_fallthru
          _
      $region24: #{tpu_custom_call.1} parent=5 // pred_fallthru
        _
      %p306 = scmp.le.s32.totalorder 1, %s18
      %p307 = scmp.lt.s32.totalorder %s18, 7
      %p308 = pnand %p306, %p307
      %p309 = pneg %p308
      // Predicated region
      $region37: #{tpu_custom_call.1} parent=5 // pred_check
        _
      $region38: #{tpu_custom_call.1} parent=5 // pred_check_branch
        %311 = sbr.rel (%p308) target = $region40
      $region39: #{tpu_custom_call.1} parent=5 // pred_region
        %s312 = ssub.s32 %s18, 1
        %s313 = sand.u32 %s23, 1
        %s314 = scalar_lea.sflag [#allocation3], %s313
        %s315 = sand.u32 %s45, 1
        %s316 = smul.addr %s315, 32
        %s317 = scalar_lea.vmem [#allocation2], %s316
        // Predicated region
        $region41: #{tpu_custom_call.1} parent=39 // pred_check
          %p318 = pneg %p58
        $region42: #{tpu_custom_call.1} parent=39 // pred_check_branch
          %320 = sbr.rel (%p318) target = $region44
        $region43: #{tpu_custom_call.1} parent=39 // pred_region
          %322 = dma.done %s314, 512
        $region44: #{tpu_custom_call.1} parent=39 // pred_fallthru
          _
        // Predicated region
        $region45: #{tpu_custom_call.1} parent=39 // pred_check
          %p323 = pneg %p79
        $region46: #{tpu_custom_call.1} parent=39 // pred_check_branch
          %325 = sbr.rel (%p323) target = $region48
        $region47: #{tpu_custom_call.1} parent=39 // pred_region
          %327 = dma.done [#allocation6], 2048
        $region48: #{tpu_custom_call.1} parent=39 // pred_fallthru
          _
        %s328 = sand.u32 %s23, 1
        %s329 = scalar_lea.sflag [#allocation3], %s328
        %s330 = sand.u32 %s113, 1
        %s331 = smul.addr %s330, 64
        %s332 = scalar_lea.vmem [#allocation7], %s331
        // Predicated region
        $region49: #{tpu_custom_call.1} parent=39 // pred_check
          %p333 = pneg %p126
        $region50: #{tpu_custom_call.1} parent=39 // pred_check_branch
          %335 = sbr.rel (%p333) target = $region52
        $region51: #{tpu_custom_call.1} parent=39 // pred_region
          %337 = dma.done %s329, 1024
        $region52: #{tpu_custom_call.1} parent=39 // pred_fallthru
          _
        %s338 = sand.u32 %s23, 1
        %s339 = scalar_lea.sflag [#allocation3], %s338
        %s340 = sand.u32 %s139, 1
        %s341 = scalar_lea.vmem [#allocation8], %s340
        // Predicated region
        $region53: #{tpu_custom_call.1} parent=39 // pred_check
          %p342 = pneg %p152
        $region54: #{tpu_custom_call.1} parent=39 // pred_check_branch
          %344 = sbr.rel (%p342) target = $region56
        $region55: #{tpu_custom_call.1} parent=39 // pred_region
          %346 = dma.done %s339, 16
        $region56: #{tpu_custom_call.1} parent=39 // pred_fallthru
          _
        %s347 = sand.u32 %s23, 1
        %s348 = scalar_lea.sflag [#allocation3], %s347
        %s349 = sand.u32 %s45, 1
        %s350 = smul.addr %s349, 32
        %s351 = scalar_lea.vmem [#allocation2], %s350
        %p352 = pneg %p58
        %p353 = pneg %p55
        %p354 = pneg %p79
        %p355 = pneg %p76
        %p356 = pneg %p100
        %p357 = pneg %p97
        %s358 = sand.u32 %s23, 1
        %s359 = scalar_lea.sflag [#allocation3], %s358
        %s360 = sand.u32 %s113, 1
        %s361 = smul.addr %s360, 64
        %s362 = scalar_lea.vmem [#allocation7], %s361
        %p363 = pneg %p126
        %p364 = pneg %p123
        %s365 = sand.u32 %s23, 1
        %s366 = scalar_lea.sflag [#allocation3], %s365
        %s367 = sand.u32 %s139, 1
        %s368 = scalar_lea.vmem [#allocation8], %s367
        %p369 = pneg %p152
        %p370 = pneg %p149
        %p371 = pneg %p180
        %p372 = pneg %p177
        %s373 = sand.u32 %s167, 1
        %s374 = scalar_lea.sflag [#allocation4], %s373
        %s375 = sand.u32 %s167, 1
        %s376 = smul.addr %s375, 2
        %s377 = scalar_lea.vmem [#allocation9], %s376
        %s378 = smul.u32 2, %s27
        %s379 = smul.u32 2, %s28
        %v380 = vld [vmem:[%s317] sm:$0xff]
        %v381 = vld [vmem:[%s317 + $0x8] sm:$0xff]
        %v382 = vld [vmem:[%s317 + $0x10] sm:$0xff]
        %v383 = vld [vmem:[%s317 + $0x18] sm:$0xff]
        %388 = vst [vmem:[#allocation1] ss:$2 sm:$0xff] %v380
        %v389 = vld.sshfl [vmem:[#allocation1] sm:$0xff pattern:$0x75316420]
        %v390 = vld.sshfl [vmem:[#allocation1 + $0x8] sm:$0xff pattern:$0x75316420]
        %s391 = scalar_lea.vmem [#allocation1], 16
        %392 = vst [vmem:[%s391] ss:$2 sm:$0xff] %v381
        %v393 = vld.sshfl [vmem:[#allocation1 + $0x10] sm:$0xff pattern:$0x75316420]
        %v394 = vld.sshfl [vmem:[#allocation1 + $0x18] sm:$0xff pattern:$0x75316420]
        %s395 = scalar_lea.vmem [#allocation1], 32
        %396 = vst [vmem:[%s395] ss:$2 sm:$0xff] %v382
        %v397 = vld.sshfl [vmem:[#allocation1 + $0x20] sm:$0xff pattern:$0x75316420]
        %v398 = vld.sshfl [vmem:[#allocation1 + $0x28] sm:$0xff pattern:$0x75316420]
        %s399 = scalar_lea.vmem [#allocation1], 48
        %400 = vst [vmem:[%s399] ss:$2 sm:$0xff] %v383
        %v401 = vld.sshfl [vmem:[#allocation1 + $0x30] sm:$0xff pattern:$0x75316420]
        %v402 = vld.sshfl [vmem:[#allocation1 + $0x38] sm:$0xff pattern:$0x75316420]
        %vm411 = vcmask 1043456
        %v412 = vsel %vm411, %v389, 0.0
        %v413 = vsel %vm411, %v393, 0.0
        %v414 = vadd.f32 %v412, %v413
        %v415 = vrot.slane %v414, 4
        %v416 = vadd.f32 %v414, %v415
        %v417 = vrot.slane %v416, 2
        %v418 = vadd.f32 %v416, %v417
        %v419 = vrot.slane %v418, 1
        %v420 = vadd.f32 %v418, %v419
        %v421 = vsel %vm411, %v390, 0.0
        %v422 = vsel %vm411, %v394, 0.0
        %v423 = vadd.f32 %v421, %v422
        %v424 = vrot.slane %v423, 4
        %v425 = vadd.f32 %v423, %v424
        %v426 = vrot.slane %v425, 2
        %v427 = vadd.f32 %v425, %v426
        %v428 = vrot.slane %v427, 1
        %v429 = vadd.f32 %v427, %v428
        %v430 = vsel %vm411, %v397, 0.0
        %v431 = vsel %vm411, %v401, 0.0
        %v432 = vadd.f32 %v430, %v431
        %v433 = vrot.slane %v432, 4
        %v434 = vadd.f32 %v432, %v433
        %v435 = vrot.slane %v434, 2
        %v436 = vadd.f32 %v434, %v435
        %v437 = vrot.slane %v436, 1
        %v438 = vadd.f32 %v436, %v437
        %v439 = vsel %vm411, %v398, 0.0
        %v440 = vsel %vm411, %v402, 0.0
        %v441 = vadd.f32 %v439, %v440
        %v442 = vrot.slane %v441, 4
        %v443 = vadd.f32 %v441, %v442
        %v444 = vrot.slane %v443, 2
        %v445 = vadd.f32 %v443, %v444
        %v446 = vrot.slane %v445, 1
        %v447 = vadd.f32 %v445, %v446
        %v448 = vpack.c.bf16 %v420, %v420
        %v449 = vpack.c.bf16 %v429, %v429
        %v450 = vpack.c.bf16 %v438, %v438
        %v451 = vpack.c.bf16 %v447, %v447
        %v452 = vld [vmem:[#allocation5] sm:$0xf]
        %v453 = vld [vmem:[#allocation5 + $0x4] sm:$0xf]
        %v454 = vld [vmem:[#allocation5 + $0x8] sm:$0xf]
        %v455 = vld [vmem:[#allocation5 + $0xc] sm:$0xf]
        %v456 = vld [vmem:[#allocation5 + $0x10] sm:$0xf]
        %v457 = vld [vmem:[#allocation5 + $0x14] sm:$0xf]
        %v458 = vld [vmem:[#allocation5 + $0x18] sm:$0xf]
        %v459 = vld [vmem:[#allocation5 + $0x1c] sm:$0xf]
        %v460 = vld [vmem:[#allocation5 + $0x20] sm:$0xf]
        %v461 = vld [vmem:[#allocation5 + $0x24] sm:$0xf]
        %v462 = vld [vmem:[#allocation5 + $0x28] sm:$0xf]
        %v463 = vld [vmem:[#allocation5 + $0x2c] sm:$0xf]
        %v464 = vld [vmem:[#allocation5 + $0x30] sm:$0xf]
        %v465 = vld [vmem:[#allocation5 + $0x34] sm:$0xf]
        %v466 = vld [vmem:[#allocation5 + $0x38] sm:$0xf]
        %v467 = vld [vmem:[#allocation5 + $0x3c] sm:$0xf]
        %v468 = vld [vmem:[#allocation5 + $0x40] sm:$0xf]
        %v469 = vld [vmem:[#allocation5 + $0x44] sm:$0xf]
        %v470 = vld [vmem:[#allocation5 + $0x48] sm:$0xf]
        %v471 = vld [vmem:[#allocation5 + $0x4c] sm:$0xf]
        %v472 = vld [vmem:[#allocation5 + $0x50] sm:$0xf]
        %v473 = vld [vmem:[#allocation5 + $0x54] sm:$0xf]
        %v474 = vld [vmem:[#allocation5 + $0x58] sm:$0xf]
        %v475 = vld [vmem:[#allocation5 + $0x5c] sm:$0xf]
        %v476 = vld [vmem:[#allocation5 + $0x60] sm:$0xf]
        %v477 = vld [vmem:[#allocation5 + $0x64] sm:$0xf]
        %v478 = vld [vmem:[#allocation5 + $0x68] sm:$0xf]
        %v479 = vld [vmem:[#allocation5 + $0x6c] sm:$0xf]
        %v480 = vld [vmem:[#allocation5 + $0x70] sm:$0xf]
        %v481 = vld [vmem:[#allocation5 + $0x74] sm:$0xf]
        %v482 = vld [vmem:[#allocation5 + $0x78] sm:$0xf]
        %v483 = vld [vmem:[#allocation5 + $0x7c] sm:$0xf]
        %v484 = vld [vmem:[%s2] sm:$0x1]
        %v486 = vperm.slane %v484, 0
        %v492 = vunpack.c.l.b16 %v448
        %v493 = vunpack.c.l.b16 %v449
        %v494 = vunpack.c.l.b16 %v450
        %v495 = vunpack.c.l.b16 %v451
        %vm496 = vcmask 1041409
        %v497 = vsel %vm496, %v494, %v492
        %v498 = vsel %vm496, %v495, %v493
        %v499 = vpack.c.b16 %v497, %v497
        %v500 = vpack.c.b16 %v498, %v498
        %v535 = vunpack.c.l.b16 %v452
        %v536 = vunpack.c.l.b16 %v453
        %v537 = vunpack.c.l.b16 %v454
        %v538 = vunpack.c.l.b16 %v455
        %v539 = vunpack.c.l.b16 %v456
        %v540 = vunpack.c.l.b16 %v457
        %v541 = vunpack.c.l.b16 %v458
        %v542 = vunpack.c.l.b16 %v459
        %v543 = vunpack.c.l.b16 %v460
        %v544 = vunpack.c.l.b16 %v461
        %v545 = vunpack.c.l.b16 %v462
        %v546 = vunpack.c.l.b16 %v463
        %v547 = vunpack.c.l.b16 %v464
        %v548 = vunpack.c.l.b16 %v465
        %v549 = vunpack.c.l.b16 %v466
        %v550 = vunpack.c.l.b16 %v467
        %v551 = vunpack.c.l.b16 %v468
        %v552 = vunpack.c.l.b16 %v469
        %v553 = vunpack.c.l.b16 %v470
        %v554 = vunpack.c.l.b16 %v471
        %v555 = vunpack.c.l.b16 %v472
        %v556 = vunpack.c.l.b16 %v473
        %v557 = vunpack.c.l.b16 %v474
        %v558 = vunpack.c.l.b16 %v475
        %v559 = vunpack.c.l.b16 %v476
        %v560 = vunpack.c.l.b16 %v477
        %v561 = vunpack.c.l.b16 %v478
        %v562 = vunpack.c.l.b16 %v479
        %v563 = vunpack.c.l.b16 %v480
        %v564 = vunpack.c.l.b16 %v481
        %v565 = vunpack.c.l.b16 %v482
        %v566 = vunpack.c.l.b16 %v483
        %v567 = vpack.c.b16 %v536, %v535
        %v568 = vpack.c.b16 %v538, %v537
        %v569 = vpack.c.b16 %v540, %v539
        %v570 = vpack.c.b16 %v542, %v541
        %v571 = vpack.c.b16 %v544, %v543
        %v572 = vpack.c.b16 %v546, %v545
        %v573 = vpack.c.b16 %v548, %v547
        %v574 = vpack.c.b16 %v550, %v549
        %v575 = vpack.c.b16 %v552, %v551
        %v576 = vpack.c.b16 %v554, %v553
        %v577 = vpack.c.b16 %v556, %v555
        %v578 = vpack.c.b16 %v558, %v557
        %v579 = vpack.c.b16 %v560, %v559
        %v580 = vpack.c.b16 %v562, %v561
        %v581 = vpack.c.b16 %v564, %v563
        %v582 = vpack.c.b16 %v566, %v565
        %599 = vmatpush.bf16.msra.mxu0 %v574
        %600 = vmatpush.bf16.msra.mxu0 %v573
        %601 = vmatpush.bf16.msra.mxu0 %v572
        %602 = vmatpush.bf16.msra.mxu0 %v571
        %603 = vmatpush.bf16.msra.mxu0 %v570
        %604 = vmatpush.bf16.msra.mxu0 %v569
        %605 = vmatpush.bf16.msra.mxu0 %v568
        %606 = vmatpush.bf16.msra.mxu0 %v567
        %607 = vmatmul.bf16.gmra.mxu0 %v499
        %v608 = vpop.f32.mrf.mxu0
        %v609 = vadd.f32 %v486, %v608
        %v610 = vpop.f32.mrf.mxu0
        %611 = vdwg.mxu0
        %612 = vmatpush.bf16.msra.mxu0 %v582
        %613 = vmatpush.bf16.msra.mxu0 %v581
        %614 = vmatpush.bf16.msra.mxu0 %v580
        %615 = vmatpush.bf16.msra.mxu0 %v579
        %616 = vmatpush.bf16.msra.mxu0 %v578
        %617 = vmatpush.bf16.msra.mxu0 %v577
        %618 = vmatpush.bf16.msra.mxu0 %v576
        %619 = vmatpush.bf16.msra.mxu0 %v575
        %620 = vmatmul.bf16.gmra.mxu0 %v500
        %v621 = vpop.f32.mrf.mxu0
        %v622 = vadd.f32 %v609, %v621
        %v623 = vpop.f32.mrf.mxu0
        %624 = vdwg.mxu0
        %v625 = vmax.f32 %v622, 0.0
        %v626 = vpack.c.bf16 %v625, %v625
        %v627 = vld [vmem:[%s332] sm:$0xf]
        %v628 = vld [vmem:[%s332 + $0x4] sm:$0xf]
        %v629 = vld [vmem:[%s332 + $0x8] sm:$0xf]
        %v630 = vld [vmem:[%s332 + $0xc] sm:$0xf]
        %v631 = vld [vmem:[%s332 + $0x10] sm:$0xf]
        %v632 = vld [vmem:[%s332 + $0x14] sm:$0xf]
        %v633 = vld [vmem:[%s332 + $0x18] sm:$0xf]
        %v634 = vld [vmem:[%s332 + $0x1c] sm:$0xf]
        %v635 = vld [vmem:[%s332 + $0x20] sm:$0xf]
        %v636 = vld [vmem:[%s332 + $0x24] sm:$0xf]
        %v637 = vld [vmem:[%s332 + $0x28] sm:$0xf]
        %v638 = vld [vmem:[%s332 + $0x2c] sm:$0xf]
        %v639 = vld [vmem:[%s332 + $0x30] sm:$0xf]
        %v640 = vld [vmem:[%s332 + $0x34] sm:$0xf]
        %v641 = vld [vmem:[%s332 + $0x38] sm:$0xf]
        %v642 = vld [vmem:[%s332 + $0x3c] sm:$0xf]
        %v643 = vld [vmem:[%s341] sm:$0x1]
        %v645 = vperm.slane %v643, 0
        %v663 = vunpack.c.l.b16 %v627
        %v664 = vunpack.c.l.b16 %v628
        %v665 = vunpack.c.l.b16 %v629
        %v666 = vunpack.c.l.b16 %v630
        %v667 = vunpack.c.l.b16 %v631
        %v668 = vunpack.c.l.b16 %v632
        %v669 = vunpack.c.l.b16 %v633
        %v670 = vunpack.c.l.b16 %v634
        %v671 = vunpack.c.l.b16 %v635
        %v672 = vunpack.c.l.b16 %v636
        %v673 = vunpack.c.l.b16 %v637
        %v674 = vunpack.c.l.b16 %v638
        %v675 = vunpack.c.l.b16 %v639
        %v676 = vunpack.c.l.b16 %v640
        %v677 = vunpack.c.l.b16 %v641
        %v678 = vunpack.c.l.b16 %v642
        %v679 = vpack.c.b16 %v664, %v663
        %v680 = vpack.c.b16 %v666, %v665
        %v681 = vpack.c.b16 %v668, %v667
        %v682 = vpack.c.b16 %v670, %v669
        %v683 = vpack.c.b16 %v672, %v671
        %v684 = vpack.c.b16 %v674, %v673
        %v685 = vpack.c.b16 %v676, %v675
        %v686 = vpack.c.b16 %v678, %v677
        %695 = vmatpush.bf16.msra.mxu0 %v686
        %696 = vmatpush.bf16.msra.mxu0 %v685
        %697 = vmatpush.bf16.msra.mxu0 %v684
        %698 = vmatpush.bf16.msra.mxu0 %v683
        %699 = vmatpush.bf16.msra.mxu0 %v682
        %700 = vmatpush.bf16.msra.mxu0 %v681
        %701 = vmatpush.bf16.msra.mxu0 %v680
        %702 = vmatpush.bf16.msra.mxu0 %v679
        %703 = vmatmul.bf16.gmra.mxu0 %v626
        %v704 = vpop.f32.mrf.mxu0
        %v705 = vadd.f32 %v645, %v704
        %v706 = vpop.f32.mrf.mxu0
        %707 = vdwg.mxu0
        %v708 = vmax.f32 %v705, 0.0
        %709 = vst [vmem:[%s377] sm:$0x3] %v708
        %s710 = sand.u32 %s167, 1
        %s711 = scalar_lea.sflag [#allocation4], %s710
        %s712 = sand.u32 %s167, 1
        %s713 = smul.addr %s712, 2
        %s714 = scalar_lea.vmem [#allocation9], %s713
        // Predicated region
        $region57: #{tpu_custom_call.1} parent=39 // pred_check
          %p715 = pneg %p177
        $region58: #{tpu_custom_call.1} parent=39 // pred_check_branch
          %717 = sbr.rel (%p715) target = $region60
        $region59: #{tpu_custom_call.1} parent=39 // pred_region
          %719 = vsyncadd %s711, 0
          %s720 = smul.addr %s27, 6
          %s721 = sadd.s32 %s28, %s720
          %s722 = smul.addr %s721, 2
          %s723 = scalar_lea.hbm %s5, %s722
          %s725 = sshll.u32 %s714, 4
          %s726 = int_to_ptr.vmem [resolvable:$true] %s725
          %s727 = sshll.u32 %s723, 4
          %s728 = int_to_ptr.hbm [resolvable:$true] %s727
          %730 = dma.vmem_to_hbm [thread:$0]  %s726, 32, %s728, %s711
        $region60: #{tpu_custom_call.1} parent=39 // pred_fallthru
          _
      $region40: #{tpu_custom_call.1} parent=5 // pred_fallthru
        _
      %p731 = scmp.le.s32.totalorder 2, %s18
      // Predicated region
      $region61: #{tpu_custom_call.1} parent=5 // pred_check
        %p732 = pneg %p731
      $region62: #{tpu_custom_call.1} parent=5 // pred_check_branch
        %734 = sbr.rel (%p732) target = $region64
      $region63: #{tpu_custom_call.1} parent=5 // pred_region
        %s735 = ssub.s32 %s18, 2
        // Predicated region
        $region65: #{tpu_custom_call.1} parent=63 // pred_check
          %p736 = pneg %p183
        $region66: #{tpu_custom_call.1} parent=63 // pred_check_branch
          %738 = sbr.rel (%p736) target = $region68
        $region67: #{tpu_custom_call.1} parent=63 // pred_region
          %s739 = sand.u32 %s168, 1
          %s740 = scalar_lea.sflag [#allocation4], %s739
          %s741 = sand.u32 %s168, 1
          %s742 = smul.addr %s741, 2
          %s743 = scalar_lea.vmem [#allocation9], %s742
          %745 = dma.done %s740, 32
        $region68: #{tpu_custom_call.1} parent=63 // pred_fallthru
          _
      $region64: #{tpu_custom_call.1} parent=5 // pred_fallthru
        _
    $region6: #{tpu_custom_call.1} parent=1 // loop_footer
      %s22 = sadd.s32 1, %s18
    $region7: #{tpu_custom_call.1} parent=1 // loop_footer_branch
      %17 = sbr.rel target = $region3
    $region8: #{tpu_custom_call.1} parent=1 // loop_exit
      _
    %746 = vsyncpa [#allocation3], 1
    %s747 = scalar_lea.sflag [#allocation3], 1
    %748 = vsyncpa %s747, 1
    %749 = vsyncpa [#allocation6], 1
    %750 = vsyncpa [#allocation4], 1
    %s751 = scalar_lea.sflag [#allocation4], 1
    %752 = vsyncpa %s751, 1

</llo_original>
